<compile_context>
chip_gen: v7x
topology: tpu7x:2x2x1
jax: 0.10.0
libtpu: 0.0.40
codegen_flags: <defaults>
</compile_context>

<pallas_src>
import numpy as np
import jax
import jax.numpy as jnp
from jax.experimental import pallas as pl
from jax.experimental.pallas import tpu as pltpu

L_IN = 7            # sequence length implied by fc1 = Linear(12 * 5, 50)
N_CH = 5            # conv out channels
# (kernel_size, offset of the branch inside each channel's 12-wide flatten segment)
BRANCHES = ((2, 0), (3, 5), (4, 9))
MAX_TILE = 8192     # cap on batch lanes per grid step (multiple of 128)


# -----------------------------------------------------------------------------
# Kernel: 3 matmuls, 2 ReLUs, 1 aligned max.  All biases folded into weights.
# -----------------------------------------------------------------------------
def net_kernel(x_ref, cw_ref, w1_ref, w2_ref, out_ref):
    x = x_ref[...]                                            # (8, T); row 7 == 1.0

    # conv1d for all 3 branches x 5 channels x BOTH maxpool partners in one
    # MXU matmul.  Rows 0..63 hold the "left" pool element, rows 64..127 the
    # "right" one; conv bias is folded via the ones row of x.
    conv = jnp.maximum(
        jnp.dot(cw_ref[...], x, preferred_element_type=jnp.float32), 0.0)  # (128, T)

    # maxpool1d(kernel=2, stride=1): one sublane-aligned max of the two halves.
    pooled = jnp.maximum(conv[0:64, :], conv[64:128, :])      # (64, T); row 60 == 1.0

    # fc1 (+bias via pooled ones row) + ReLU
    h = jnp.maximum(
        jnp.dot(w1_ref[...], pooled, preferred_element_type=jnp.float32), 0.0)  # (64, T); row 50 == 1.0

    # fc2 (+bias via h ones row)
    out_ref[...] = jnp.dot(w2_ref[...], h, preferred_element_type=jnp.float32)  # (3, T)


# -----------------------------------------------------------------------------
# One-time weight packing (host-side numpy; hoisted out of the hot path).
# -----------------------------------------------------------------------------
def pack_weights(params):
    """Returns (cw, w1p, w2p):

    cw  (128, 8): row r (r<60)   = conv taps of pooled feature r, pool-left  (time t)
                  row r+64       = conv taps of pooled feature r, pool-right (time t+1)
                  column 7       = conv bias (x row 7 is a ones row)
                  row 60         = ones-producer for the fc1 bias column
    w1p (64, 64): rows 0..49 = fc1 weight, columns permuted to pooled-row order,
                  column 60 = fc1 bias; row 50 = ones-producer for the fc2 bias.
    w2p (3, 64):  columns 0..49 = fc2 weight, column 50 = fc2 bias.
    """
    w1, b1, w2, b2, w3, b3, fw1, fb1, fw2, fb2 = [
        np.asarray(p, np.float32) for p in params]

    cw = np.zeros((128, 8), np.float32)
    perm = []
    r = 0
    for (K, seg_off), w, b in zip(BRANCHES, (w1, w2, w3), (b1, b2, b3)):
        pooled_len = L_IN - K            # (L_IN - K + 1) conv outputs -> len-1 pooled
        for t in range(pooled_len):
            for c in range(N_CH):
                cw[r, t:t + K] = w[c]            # left pool element: conv time t
                cw[r, 7] = b[c]
                cw[r + 64, t + 1:t + 1 + K] = w[c]   # right pool element: conv time t+1
                cw[r + 64, 7] = b[c]
                # PyTorch flatten order: flat feature index = c*12 + seg_off + t
                perm.append(c * 12 + seg_off + t)
                r += 1
    assert r == 60
    cw[60, 7] = 1.0                       # pooled row 60 becomes constant 1.0

    w1p = np.zeros((64, 64), np.float32)
    w1p[:50, :60] = fw1[:, np.array(perm, np.int64)]
    w1p[:50, 60] = fb1                    # fc1 bias via pooled ones row
    w1p[50, 60] = 1.0                     # h row 50 becomes constant 1.0

    w2p = np.zeros((3, 64), np.float32)
    w2p[:, :50] = fw2
    w2p[:, 50] = fb2                      # fc2 bias via h ones row

    return jnp.asarray(cw), jnp.asarray(w1p), jnp.asarray(w2p)


def _tile_plan(B):
    """Adaptive batch tile: multiple of 128, <= MAX_TILE, even balanced tile
    count for v7x megacore when the batch is big enough."""
    if B <= 128:
        return 128, 1
    n = max(2, 2 * pl.cdiv(pl.cdiv(B, MAX_TILE), 2))   # smallest even n with tile <= MAX_TILE
    tile = pl.cdiv(pl.cdiv(B, n), 128) * 128
    return tile, pl.cdiv(B, tile)


@jax.jit
def net_forward(x, packed):
    cw, w1p, w2p = packed
    B = x.shape[0]
    tile, n_tiles = _tile_plan(B)
    b_pad = tile * n_tiles

    # batch-on-lanes layout: (B, 7) -> (8, b_pad); row 7 is the ones row that
    # carries the conv bias.  (Tiny: 32 * b_pad bytes.)
    xt = (jnp.zeros((8, b_pad), jnp.float32)
          .at[7, :].set(1.0)
          .at[:L_IN, :B].set(x.T))

    def const(shape):   # full-array block, constant index -> stays VMEM resident
        return pl.BlockSpec(shape, lambda i: (0, 0))

    out = pl.pallas_call(
        net_kernel,
        out_shape=jax.ShapeDtypeStruct((3, b_pad), jnp.float32),
        grid=(n_tiles,),
        in_specs=[pl.BlockSpec((8, tile), lambda i: (0, i)),   # x tile
                  const((128, 8)),                             # conv taps (+bias col)
                  const((64, 64)),                             # fc1 (+bias col)
                  const((3, 64))],                             # fc2 (+bias col)
        out_specs=pl.BlockSpec((3, tile), lambda i: (0, i)),
        compiler_params=pltpu.CompilerParams(
            dimension_semantics=("parallel",),                 # megacore on v7x
            vmem_limit_bytes=32 << 20),
    )(xt, cw, w1p, w2p)
    return out[:, :B].T                                        # (B, 3)


# --- plain-JAX reference (mirrors the PyTorch forward) for verification ------
def net_ref(x, params):
    w1, b1, w2, b2, w3, b3, fw1, fb1, fw2, fb2 = params

    def branch(w, b, K):
        out_len = x.shape[1] - K + 1
        y = jnp.stack(
            [sum(x[:, k:k + out_len] * w[c, k] for k in range(K)) + b[c]
             for c in range(N_CH)], axis=1)                 # (B, 5, out_len)
        y = jnp.maximum(y, 0.0)
        return jnp.maximum(y[:, :, :-1], y[:, :, 1:])       # maxpool k=2 s=1

    p1 = branch(w1, b1, 2)
    p2 = branch(w2, b2, 3)
    p3 = branch(w3, b3, 4)
    feat = jnp.concatenate([p1, p2, p3], axis=2).reshape(x.shape[0], 60)
    h = jnp.maximum(feat @ fw1.T + fb1, 0.0)
    return h @ fw2.T + fb2


if __name__ == "__main__":
    key = jax.random.PRNGKey(0)
    keys = jax.random.split(key, 12)

    def uinit(k, shape, fan_in):
        bound = float(fan_in) ** -0.5                       # PyTorch default init
        return jax.random.uniform(k, shape, jnp.float32, -bound, bound)

    w1 = uinit(keys[1], (5, 2), 2); b1 = uinit(keys[2], (5,), 2)
    w2 = uinit(keys[3], (5, 3), 3); b2 = uinit(keys[4], (5,), 3)
    w3 = uinit(keys[5], (5, 4), 4); b3 = uinit(keys[6], (5,), 4)
    fw1 = uinit(keys[7], (50, 60), 60); fb1 = uinit(keys[8], (50,), 60)
    fw2 = uinit(keys[9], (3, 50), 50);  fb2 = uinit(keys[10], (3,), 50)
    params = (w1, b1, w2, b2, w3, b3, fw1, fb1, fw2, fb2)

    packed = pack_weights(params)   # once, at init -- hoisted out of the forward

    # small batch (as in the PyTorch spec) plus a larger ragged batch that
    # exercises multiple grid steps, megacore split and the padded tail.
    # Tolerance reflects default (single-pass bf16-operand) MXU precision.
    for B, xkey in ((2, keys[0]), (2600, keys[11])):
        x = jax.random.normal(xkey, (B, L_IN), jnp.float32)
        out = jax.block_until_ready(net_forward(x, packed))
        ref = net_ref(x, params)
        assert out.shape == (B, 3)
        err = float(jnp.max(jnp.abs(out - ref)))
        assert err < 5e-2, (B, err)
    print("KERNEL_OK")
</pallas_src>

<mosaic_0001>
module attributes {stable_mosaic.version = 11 : i64} {
  func.func @net_kernel(%arg0: i32, %arg1: memref<8x128xf32, #tpu.memory_space<vmem>>, %arg2: memref<128x8xf32, #tpu.memory_space<vmem>>, %arg3: memref<64x64xf32, #tpu.memory_space<vmem>>, %arg4: memref<3x64xf32, #tpu.memory_space<vmem>>, %arg5: memref<3x128xf32, #tpu.memory_space<vmem>>) attributes {dimension_semantics = [#tpu.dimension_semantics<parallel>], iteration_bounds = array<i64: 1>, scalar_prefetch = 0 : i64, scratch_operands = 0 : i64, tpu.core_type = #tpu.core_type<tc>, window_params = [{transform_indices = @transform_0, window_bounds = array<i64: 8, 128>}, {pipeline_mode = #tpu.pipeline_mode<synchronous>, transform_indices = @transform_1, window_bounds = array<i64: 128, 8>}, {pipeline_mode = #tpu.pipeline_mode<synchronous>, transform_indices = @transform_2, window_bounds = array<i64: 64, 64>}, {pipeline_mode = #tpu.pipeline_mode<synchronous>, transform_indices = @transform_3, window_bounds = array<i64: 3, 64>}, {transform_indices = @transform_4, window_bounds = array<i64: 3, 128>}]} {
    %c0 = arith.constant 0 : index
    %c0_0 = arith.constant 0 : index
    %0 = vector.load %arg1[%c0, %c0_0] : memref<8x128xf32, #tpu.memory_space<vmem>>, vector<8x128xf32>
    %c0_1 = arith.constant 0 : index
    %c0_2 = arith.constant 0 : index
    %1 = vector.load %arg2[%c0_1, %c0_2] : memref<128x8xf32, #tpu.memory_space<vmem>>, vector<128x8xf32>
    %cst = arith.constant dense<0.000000e+00> : vector<128x128xf32>
    %2 = tpu.matmul %1, %0, %cst {dimension_numbers = #tpu.dot_dimension_numbers<[1], [0], [0], [1], [0, 0, 1, 1], [], []>} : vector<128x8xf32>, vector<8x128xf32>, vector<128x128xf32> -> vector<128x128xf32>
    %cst_3 = arith.constant 0.000000e+00 : f32
    %3 = vector.broadcast %cst_3 : f32 to vector<128x128xf32>
    %4 = arith.maximumf %2, %3 : vector<128x128xf32>
    %5 = vector.extract_strided_slice %4 {offsets = [0, 0], sizes = [64, 128], strides = [1, 1]} : vector<128x128xf32> to vector<64x128xf32>
    %6 = vector.extract_strided_slice %4 {offsets = [64, 0], sizes = [64, 128], strides = [1, 1]} : vector<128x128xf32> to vector<64x128xf32>
    %7 = arith.maximumf %5, %6 : vector<64x128xf32>
    %c0_4 = arith.constant 0 : index
    %c0_5 = arith.constant 0 : index
    %8 = vector.load %arg3[%c0_4, %c0_5] : memref<64x64xf32, #tpu.memory_space<vmem>>, vector<64x64xf32>
    %cst_6 = arith.constant dense<0.000000e+00> : vector<64x128xf32>
    %9 = tpu.matmul %8, %7, %cst_6 {dimension_numbers = #tpu.dot_dimension_numbers<[1], [0], [0], [1], [0, 0, 1, 1], [], []>} : vector<64x64xf32>, vector<64x128xf32>, vector<64x128xf32> -> vector<64x128xf32>
    %cst_7 = arith.constant 0.000000e+00 : f32
    %10 = vector.broadcast %cst_7 : f32 to vector<64x128xf32>
    %11 = arith.maximumf %9, %10 : vector<64x128xf32>
    %c0_8 = arith.constant 0 : index
    %c0_9 = arith.constant 0 : index
    %12 = vector.load %arg4[%c0_8, %c0_9] : memref<3x64xf32, #tpu.memory_space<vmem>>, vector<3x64xf32>
    %cst_10 = arith.constant dense<0.000000e+00> : vector<3x128xf32>
    %13 = tpu.matmul %12, %11, %cst_10 {dimension_numbers = #tpu.dot_dimension_numbers<[1], [0], [0], [1], [0, 0, 1, 1], [], []>} : vector<3x64xf32>, vector<64x128xf32>, vector<3x128xf32> -> vector<3x128xf32>
    %c0_11 = arith.constant 0 : index
    %c0_12 = arith.constant 0 : index
    %14 = vector.load %arg5[%c0_11, %c0_12] : memref<3x128xf32, #tpu.memory_space<vmem>>, vector<3x128xf32>
    tpu.vector_store %arg5[%c0_11, %c0_12], %13 {strides = array<i32>} : memref<3x128xf32, #tpu.memory_space<vmem>>, vector<3x128xf32>,
    return
  }
  func.func @transform_0(%arg0: i32) -> (i32, i32) {
    %c0_i32 = arith.constant 0 : i32
    %c0_i32_0 = arith.constant 0 : i32
    return %c0_i32, %arg0 : i32, i32
  }
  func.func @transform_1(%arg0: i32) -> (i32, i32) {
    %c0_i32 = arith.constant 0 : i32
    %c0_i32_0 = arith.constant 0 : i32
    %c0_i32_1 = arith.constant 0 : i32
    return %c0_i32, %c0_i32_0 : i32, i32
  }
  func.func @transform_2(%arg0: i32) -> (i32, i32) {
    %c0_i32 = arith.constant 0 : i32
    %c0_i32_0 = arith.constant 0 : i32
    %c0_i32_1 = arith.constant 0 : i32
    return %c0_i32, %c0_i32_0 : i32, i32
  }
  func.func @transform_3(%arg0: i32) -> (i32, i32) {
    %c0_i32 = arith.constant 0 : i32
    %c0_i32_0 = arith.constant 0 : i32
    %c0_i32_1 = arith.constant 0 : i32
    return %c0_i32, %c0_i32_0 : i32, i32
  }
  func.func @transform_4(%arg0: i32) -> (i32, i32) {
    %c0_i32 = arith.constant 0 : i32
    %c0_i32_0 = arith.constant 0 : i32
    return %c0_i32, %arg0 : i32, i32
  }
}

</mosaic_0001>

<llo_original>
// kernel: net_forward.1
$region0: #{net_forward.1}
  #allocation0 [shape = 'u32[]', space=smem, size = 0x4, offset = 0x4, fixed_abs, tag = 'smem constant byte address 0x4 - core index']
  #allocation1 [shape = 'u32[144,128]{1,0:T(1,128)}', space=vmem, size = 0x12000, scoped, tag = 'internal scratch']
  %s0 = inlined_call_operand.vmem [shape: f32[8,128], index: 0, kind: input, shape index: {}]
  %s1 = inlined_call_operand.vmem [shape: f32[128,8], index: 1, kind: input, shape index: {}]
  %s2 = inlined_call_operand.vmem [shape: f32[64,64], index: 2, kind: input, shape index: {}]
  %s3 = inlined_call_operand.vmem [shape: f32[3,64], index: 3, kind: input, shape index: {}]
  %s4 = inlined_call_operand.vmem [shape: f32[3,128], index: 4, kind: output, shape index: {}]
  %s5 = sld [smem:[#allocation0]]
  $region26: #{net_forward.1} parent=0
    _
  %s7 = ssub.s32 1, %s5
  %s8 = scalar_select 0, %s7, %s5
  // Predicated region
  $region2: #{net_forward.1} parent=0 // pred_check
    _
  $region3: #{net_forward.1} parent=0 // pred_check_branch
    %10 = sbr.rel (0) target = $region5
  $region4: #{net_forward.1} parent=0 // pred_region
    _
  $region5: #{net_forward.1} parent=0 // pred_fallthru
    _
  // Predicated region
  $region6: #{net_forward.1} parent=0 // pred_check
    _
  $region7: #{net_forward.1} parent=0 // pred_check_branch
    %12 = sbr.rel (0) target = $region9
  $region8: #{net_forward.1} parent=0 // pred_region
    _
  $region9: #{net_forward.1} parent=0 // pred_fallthru
    _
  // Predicated region
  $region10: #{net_forward.1} parent=0 // pred_check
    _
  $region11: #{net_forward.1} parent=0 // pred_check_branch
    %14 = sbr.rel (0) target = $region13
  $region12: #{net_forward.1} parent=0 // pred_region
    _
  $region13: #{net_forward.1} parent=0 // pred_fallthru
    _
  // Predicated region
  $region14: #{net_forward.1} parent=0 // pred_check
    _
  $region15: #{net_forward.1} parent=0 // pred_check_branch
    %16 = sbr.rel (0) target = $region17
  $region16: #{net_forward.1} parent=0 // pred_region
    _
  $region17: #{net_forward.1} parent=0 // pred_fallthru
    _
  %v17 = vld [vmem:[%s0] sm:$0xff]
  %v18 = vld [vmem:[%s1] sm:$0xff]
  %v19 = vld [vmem:[%s1 + $0x8] sm:$0xff]
  %v20 = vld [vmem:[%s1 + $0x10] sm:$0xff]
  %v21 = vld [vmem:[%s1 + $0x18] sm:$0xff]
  %v22 = vld [vmem:[%s1 + $0x20] sm:$0xff]
  %v23 = vld [vmem:[%s1 + $0x28] sm:$0xff]
  %v24 = vld [vmem:[%s1 + $0x30] sm:$0xff]
  %v25 = vld [vmem:[%s1 + $0x38] sm:$0xff]
  %v26 = vld [vmem:[%s1 + $0x40] sm:$0xff]
  %v27 = vld [vmem:[%s1 + $0x48] sm:$0xff]
  %v28 = vld [vmem:[%s1 + $0x50] sm:$0xff]
  %v29 = vld [vmem:[%s1 + $0x58] sm:$0xff]
  %v30 = vld [vmem:[%s1 + $0x60] sm:$0xff]
  %v31 = vld [vmem:[%s1 + $0x68] sm:$0xff]
  %v32 = vld [vmem:[%s1 + $0x70] sm:$0xff]
  %v33 = vld [vmem:[%s1 + $0x78] sm:$0xff]
  %vm34 = vcmask 64512
  %v36 = vsel %vm34, %v18, 0
  %v39 = vsel %vm34, %v19, 0
  %v42 = vsel %vm34, %v20, 0
  %v45 = vsel %vm34, %v21, 0
  %v48 = vsel %vm34, %v22, 0
  %v51 = vsel %vm34, %v23, 0
  %v54 = vsel %vm34, %v24, 0
  %v57 = vsel %vm34, %v25, 0
  %v60 = vsel %vm34, %v26, 0
  %v63 = vsel %vm34, %v27, 0
  %v66 = vsel %vm34, %v28, 0
  %v69 = vsel %vm34, %v29, 0
  %v72 = vsel %vm34, %v30, 0
  %v75 = vsel %vm34, %v31, 0
  %v78 = vsel %vm34, %v32, 0
  %v81 = vsel %vm34, %v33, 0
  %83 = vmatprep.subr.mxu0 0.0
  %84 = vmatpush1.msra.mxu0 %v17
  %85 = vmatprep.subr.mxu0 0.0
  %86 = vmatpush1.msra.mxu0 0.0
  %87 = vmatprep.subr.mxu0 0.0
  %88 = vmatpush1.msra.mxu0 0.0
  %89 = vmatprep.subr.mxu0 0.0
  %90 = vmatpush1.msra.mxu0 0.0
  %91 = vmatprep.subr.mxu0 0.0
  %92 = vmatpush1.msra.mxu0 0.0
  %93 = vmatprep.subr.mxu0 0.0
  %94 = vmatpush1.msra.mxu0 0.0
  %95 = vmatprep.subr.mxu0 0.0
  %96 = vmatpush1.msra.mxu0 0.0
  %97 = vmatprep.subr.mxu0 0.0
  %98 = vmatpush1.msra.mxu0 0.0
  %99 = vmatprep.subr.mxu0 0.0
  %100 = vmatpush1.msra.mxu0 0.0
  %101 = vmatprep.subr.mxu0 0.0
  %102 = vmatpush1.msra.mxu0 0.0
  %103 = vmatprep.subr.mxu0 0.0
  %104 = vmatpush1.msra.mxu0 0.0
  %105 = vmatprep.subr.mxu0 0.0
  %106 = vmatpush1.msra.mxu0 0.0
  %107 = vmatprep.subr.mxu0 0.0
  %108 = vmatpush1.msra.mxu0 0.0
  %109 = vmatprep.subr.mxu0 0.0
  %110 = vmatpush1.msra.mxu0 0.0
  %111 = vmatprep.subr.mxu0 0.0
  %112 = vmatpush1.msra.mxu0 0.0
  %113 = vmatprep.subr.mxu0 0.0
  %114 = vmatpush1.msra.mxu0 0.0
  %115 = vmatprep.subr.mxu0 0.0
  %116 = vmatpush1.msra.mxu0 0.0
  %117 = vmatprep.subr.mxu0 0.0
  %118 = vmatpush1.msra.mxu0 0.0
  %119 = vmatprep.subr.mxu0 0.0
  %120 = vmatpush1.msra.mxu0 0.0
  %121 = vmatprep.subr.mxu0 0.0
  %122 = vmatpush1.msra.mxu0 0.0
  %123 = vmatprep.subr.mxu0 0.0
  %124 = vmatpush1.msra.mxu0 0.0
  %125 = vmatprep.subr.mxu0 0.0
  %126 = vmatpush1.msra.mxu0 0.0
  %127 = vmatprep.subr.mxu0 0.0
  %128 = vmatpush1.msra.mxu0 0.0
  %129 = vmatprep.subr.mxu0 0.0
  %130 = vmatpush1.msra.mxu0 0.0
  %131 = vmatprep.subr.mxu0 0.0
  %132 = vmatpush1.msra.mxu0 0.0
  %133 = vmatprep.subr.mxu0 0.0
  %134 = vmatpush1.msra.mxu0 0.0
  %135 = vmatprep.subr.mxu0 0.0
  %136 = vmatpush1.msra.mxu0 0.0
  %137 = vmatprep.subr.mxu0 0.0
  %138 = vmatpush1.msra.mxu0 0.0
  %139 = vmatprep.subr.mxu0 0.0
  %140 = vmatpush1.msra.mxu0 0.0
  %141 = vmatprep.subr.mxu0 0.0
  %142 = vmatpush1.msra.mxu0 0.0
  %143 = vmatprep.subr.mxu0 0.0
  %144 = vmatpush1.msra.mxu0 0.0
  %145 = vmatprep.subr.mxu0 0.0
  %146 = vmatpush1.msra.mxu0 0.0
  %147 = vmatprep.mubr.f32.mxu0 0.0
  %148 = vmatmul.mubr.f32.gmra.mrb[0].mxu0 %v36
  %v149 = vpop.f32.mrb[0].mxu0
  %v150 = vadd.f32 0.0, %v149
  %v151 = vpop.f32.mrb[0].mxu0
  %152 = vmatprep.mubr.f32.mxu0 0.0
  %153 = vmatmul.mubr.f32.gmra.mrb[0].mxu0 %v39
  %v154 = vpop.f32.mrb[0].mxu0
  %v155 = vadd.f32 0.0, %v154
  %v156 = vpop.f32.mrb[0].mxu0
  %157 = vmatprep.mubr.f32.mxu0 0.0
  %158 = vmatmul.mubr.f32.gmra.mrb[0].mxu0 %v42
  %v159 = vpop.f32.mrb[0].mxu0
  %v160 = vadd.f32 0.0, %v159
  %v161 = vpop.f32.mrb[0].mxu0
  %162 = vmatprep.mubr.f32.mxu0 0.0
  %163 = vmatmul.mubr.f32.gmra.mrb[0].mxu0 %v45
  %v164 = vpop.f32.mrb[0].mxu0
  %v165 = vadd.f32 0.0, %v164
  %v166 = vpop.f32.mrb[0].mxu0
  %167 = vmatprep.mubr.f32.mxu0 0.0
  %168 = vmatmul.mubr.f32.gmra.mrb[0].mxu0 %v48
  %v169 = vpop.f32.mrb[0].mxu0
  %v170 = vadd.f32 0.0, %v169
  %v171 = vpop.f32.mrb[0].mxu0
  %172 = vmatprep.mubr.f32.mxu0 0.0
  %173 = vmatmul.mubr.f32.gmra.mrb[0].mxu0 %v51
  %v174 = vpop.f32.mrb[0].mxu0
  %v175 = vadd.f32 0.0, %v174
  %v176 = vpop.f32.mrb[0].mxu0
  %177 = vmatprep.mubr.f32.mxu0 0.0
  %178 = vmatmul.mubr.f32.gmra.mrb[0].mxu0 %v54
  %v179 = vpop.f32.mrb[0].mxu0
  %v180 = vadd.f32 0.0, %v179
  %v181 = vpop.f32.mrb[0].mxu0
  %182 = vmatprep.mubr.f32.mxu0 0.0
  %183 = vmatmul.mubr.f32.gmra.mrb[0].mxu0 %v57
  %v184 = vpop.f32.mrb[0].mxu0
  %v185 = vadd.f32 0.0, %v184
  %v186 = vpop.f32.mrb[0].mxu0
  %187 = vmatprep.mubr.f32.mxu0 0.0
  %188 = vmatmul.mubr.f32.gmra.mrb[0].mxu0 %v60
  %v189 = vpop.f32.mrb[0].mxu0
  %v190 = vadd.f32 0.0, %v189
  %v191 = vpop.f32.mrb[0].mxu0
  %192 = vmatprep.mubr.f32.mxu0 0.0
  %193 = vmatmul.mubr.f32.gmra.mrb[0].mxu0 %v63
  %v194 = vpop.f32.mrb[0].mxu0
  %v195 = vadd.f32 0.0, %v194
  %v196 = vpop.f32.mrb[0].mxu0
  %197 = vmatprep.mubr.f32.mxu0 0.0
  %198 = vmatmul.mubr.f32.gmra.mrb[0].mxu0 %v66
  %v199 = vpop.f32.mrb[0].mxu0
  %v200 = vadd.f32 0.0, %v199
  %v201 = vpop.f32.mrb[0].mxu0
  %202 = vmatprep.mubr.f32.mxu0 0.0
  %203 = vmatmul.mubr.f32.gmra.mrb[0].mxu0 %v69
  %v204 = vpop.f32.mrb[0].mxu0
  %v205 = vadd.f32 0.0, %v204
  %v206 = vpop.f32.mrb[0].mxu0
  %207 = vmatprep.mubr.f32.mxu0 0.0
  %208 = vmatmul.mubr.f32.gmra.mrb[0].mxu0 %v72
  %v209 = vpop.f32.mrb[0].mxu0
  %v210 = vadd.f32 0.0, %v209
  %v211 = vpop.f32.mrb[0].mxu0
  %212 = vmatprep.mubr.f32.mxu0 0.0
  %213 = vmatmul.mubr.f32.gmra.mrb[0].mxu0 %v75
  %v214 = vpop.f32.mrb[0].mxu0
  %v215 = vadd.f32 0.0, %v214
  %v216 = vpop.f32.mrb[0].mxu0
  %217 = vmatprep.mubr.f32.mxu0 0.0
  %218 = vmatmul.mubr.f32.gmra.mrb[0].mxu0 %v78
  %v219 = vpop.f32.mrb[0].mxu0
  %v220 = vadd.f32 0.0, %v219
  %v221 = vpop.f32.mrb[0].mxu0
  %222 = vmatprep.mubr.f32.mxu0 0.0
  %223 = vmatmul.mubr.f32.gmra.mrb[0].mxu0 %v81
  %v224 = vpop.f32.mrb[0].mxu0
  %v225 = vadd.f32 0.0, %v224
  %v226 = vpop.f32.mrb[0].mxu0
  %227 = vdwg.mxu0
  %v228 = vmax.f32 %v150, 0.0
  %v229 = vmax.f32 %v155, 0.0
  %v230 = vmax.f32 %v160, 0.0
  %v231 = vmax.f32 %v165, 0.0
  %v232 = vmax.f32 %v170, 0.0
  %v233 = vmax.f32 %v175, 0.0
  %v234 = vmax.f32 %v180, 0.0
  %v235 = vmax.f32 %v185, 0.0
  %v236 = vmax.f32 %v190, 0.0
  %v237 = vmax.f32 %v195, 0.0
  %v238 = vmax.f32 %v200, 0.0
  %v239 = vmax.f32 %v205, 0.0
  %v240 = vmax.f32 %v210, 0.0
  %v241 = vmax.f32 %v215, 0.0
  %v242 = vmax.f32 %v220, 0.0
  %v243 = vmax.f32 %v225, 0.0
  %v244 = vmax.f32 %v228, %v236
  %v245 = vmax.f32 %v229, %v237
  %v246 = vmax.f32 %v230, %v238
  %v247 = vmax.f32 %v231, %v239
  %v248 = vmax.f32 %v232, %v240
  %v249 = vmax.f32 %v233, %v241
  %v250 = vmax.f32 %v234, %v242
  %v251 = vmax.f32 %v235, %v243
  %v252 = vld [vmem:[%s2] sm:$0xff]
  %v253 = vld [vmem:[%s2 + $0x8] sm:$0xff]
  %v254 = vld [vmem:[%s2 + $0x10] sm:$0xff]
  %v255 = vld [vmem:[%s2 + $0x18] sm:$0xff]
  %v256 = vld [vmem:[%s2 + $0x20] sm:$0xff]
  %v257 = vld [vmem:[%s2 + $0x28] sm:$0xff]
  %v258 = vld [vmem:[%s2 + $0x30] sm:$0xff]
  %v259 = vld [vmem:[%s2 + $0x38] sm:$0xff]
  %vm260 = vcmask 523264
  %v262 = vsel %vm260, %v252, 0
  %v265 = vsel %vm260, %v253, 0
  %v268 = vsel %vm260, %v254, 0
  %v271 = vsel %vm260, %v255, 0
  %v274 = vsel %vm260, %v256, 0
  %v277 = vsel %vm260, %v257, 0
  %v280 = vsel %vm260, %v258, 0
  %v283 = vsel %vm260, %v259, 0
  %285 = vmatprep.subr.mxu0 0.0
  %286 = vmatpush1.msra.mxu0 %v244
  %287 = vmatprep.subr.mxu0 0.0
  %288 = vmatpush1.msra.mxu0 %v245
  %289 = vmatprep.subr.mxu0 0.0
  %290 = vmatpush1.msra.mxu0 %v246
  %291 = vmatprep.subr.mxu0 0.0
  %292 = vmatpush1.msra.mxu0 %v247
  %293 = vmatprep.subr.mxu0 0.0
  %294 = vmatpush1.msra.mxu0 %v248
  %295 = vmatprep.subr.mxu0 0.0
  %296 = vmatpush1.msra.mxu0 %v249
  %297 = vmatprep.subr.mxu0 0.0
  %298 = vmatpush1.msra.mxu0 %v250
  %299 = vmatprep.subr.mxu0 0.0
  %300 = vmatpush1.msra.mxu0 %v251
  %301 = vmatprep.subr.mxu0 0.0
  %302 = vmatpush1.msra.mxu0 0.0
  %303 = vmatprep.subr.mxu0 0.0
  %304 = vmatpush1.msra.mxu0 0.0
  %305 = vmatprep.subr.mxu0 0.0
  %306 = vmatpush1.msra.mxu0 0.0
  %307 = vmatprep.subr.mxu0 0.0
  %308 = vmatpush1.msra.mxu0 0.0
  %309 = vmatprep.subr.mxu0 0.0
  %310 = vmatpush1.msra.mxu0 0.0
  %311 = vmatprep.subr.mxu0 0.0
  %312 = vmatpush1.msra.mxu0 0.0
  %313 = vmatprep.subr.mxu0 0.0
  %314 = vmatpush1.msra.mxu0 0.0
  %315 = vmatprep.subr.mxu0 0.0
  %316 = vmatpush1.msra.mxu0 0.0
  %317 = vmatprep.subr.mxu0 0.0
  %318 = vmatpush1.msra.mxu0 0.0
  %319 = vmatprep.subr.mxu0 0.0
  %320 = vmatpush1.msra.mxu0 0.0
  %321 = vmatprep.subr.mxu0 0.0
  %322 = vmatpush1.msra.mxu0 0.0
  %323 = vmatprep.subr.mxu0 0.0
  %324 = vmatpush1.msra.mxu0 0.0
  %325 = vmatprep.subr.mxu0 0.0
  %326 = vmatpush1.msra.mxu0 0.0
  %327 = vmatprep.subr.mxu0 0.0
  %328 = vmatpush1.msra.mxu0 0.0
  %329 = vmatprep.subr.mxu0 0.0
  %330 = vmatpush1.msra.mxu0 0.0
  %331 = vmatprep.subr.mxu0 0.0
  %332 = vmatpush1.msra.mxu0 0.0
  %333 = vmatprep.subr.mxu0 0.0
  %334 = vmatpush1.msra.mxu0 0.0
  %335 = vmatprep.subr.mxu0 0.0
  %336 = vmatpush1.msra.mxu0 0.0
  %337 = vmatprep.subr.mxu0 0.0
  %338 = vmatpush1.msra.mxu0 0.0
  %339 = vmatprep.subr.mxu0 0.0
  %340 = vmatpush1.msra.mxu0 0.0
  %341 = vmatprep.subr.mxu0 0.0
  %342 = vmatpush1.msra.mxu0 0.0
  %343 = vmatprep.subr.mxu0 0.0
  %344 = vmatpush1.msra.mxu0 0.0
  %345 = vmatprep.subr.mxu0 0.0
  %346 = vmatpush1.msra.mxu0 0.0
  %347 = vmatprep.subr.mxu0 0.0
  %348 = vmatpush1.msra.mxu0 0.0
  %349 = vmatprep.mubr.f32.mxu0 0.0
  %350 = vmatmul.mubr.f32.gmra.mrb[0].mxu0 %v262
  %v351 = vpop.f32.mrb[0].mxu0
  %v352 = vadd.f32 0.0, %v351
  %v353 = vpop.f32.mrb[0].mxu0
  %354 = vmatprep.mubr.f32.mxu0 0.0
  %355 = vmatmul.mubr.f32.gmra.mrb[0].mxu0 %v265
  %v356 = vpop.f32.mrb[0].mxu0
  %v357 = vadd.f32 0.0, %v356
  %v358 = vpop.f32.mrb[0].mxu0
  %359 = vmatprep.mubr.f32.mxu0 0.0
  %360 = vmatmul.mubr.f32.gmra.mrb[0].mxu0 %v268
  %v361 = vpop.f32.mrb[0].mxu0
  %v362 = vadd.f32 0.0, %v361
  %v363 = vpop.f32.mrb[0].mxu0
  %364 = vmatprep.mubr.f32.mxu0 0.0
  %365 = vmatmul.mubr.f32.gmra.mrb[0].mxu0 %v271
  %v366 = vpop.f32.mrb[0].mxu0
  %v367 = vadd.f32 0.0, %v366
  %v368 = vpop.f32.mrb[0].mxu0
  %369 = vmatprep.mubr.f32.mxu0 0.0
  %370 = vmatmul.mubr.f32.gmra.mrb[0].mxu0 %v274
  %v371 = vpop.f32.mrb[0].mxu0
  %v372 = vadd.f32 0.0, %v371
  %v373 = vpop.f32.mrb[0].mxu0
  %374 = vmatprep.mubr.f32.mxu0 0.0
  %375 = vmatmul.mubr.f32.gmra.mrb[0].mxu0 %v277
  %v376 = vpop.f32.mrb[0].mxu0
  %v377 = vadd.f32 0.0, %v376
  %v378 = vpop.f32.mrb[0].mxu0
  %379 = vmatprep.mubr.f32.mxu0 0.0
  %380 = vmatmul.mubr.f32.gmra.mrb[0].mxu0 %v280
  %v381 = vpop.f32.mrb[0].mxu0
  %v382 = vadd.f32 0.0, %v381
  %v383 = vpop.f32.mrb[0].mxu0
  %384 = vmatprep.mubr.f32.mxu0 0.0
  %385 = vmatmul.mubr.f32.gmra.mrb[0].mxu0 %v283
  %v386 = vpop.f32.mrb[0].mxu0
  %v387 = vadd.f32 0.0, %v386
  %v388 = vpop.f32.mrb[0].mxu0
  %389 = vdwg.mxu0
  %v390 = vmax.f32 %v352, 0.0
  %v391 = vmax.f32 %v357, 0.0
  %v392 = vmax.f32 %v362, 0.0
  %v393 = vmax.f32 %v367, 0.0
  %v394 = vmax.f32 %v372, 0.0
  %v395 = vmax.f32 %v377, 0.0
  %v396 = vmax.f32 %v382, 0.0
  %v397 = vmax.f32 %v387, 0.0
  %v398 = vld [vmem:[%s3] sm:$0x7]
  %v400 = vsel %vm260, %v398, 0
  %402 = vmatprep.subr.mxu0 0.0
  %403 = vmatpush1.msra.mxu0 %v390
  %404 = vmatprep.subr.mxu0 0.0
  %405 = vmatpush1.msra.mxu0 %v391
  %406 = vmatprep.subr.mxu0 0.0
  %407 = vmatpush1.msra.mxu0 %v392
  %408 = vmatprep.subr.mxu0 0.0
  %409 = vmatpush1.msra.mxu0 %v393
  %410 = vmatprep.subr.mxu0 0.0
  %411 = vmatpush1.msra.mxu0 %v394
  %412 = vmatprep.subr.mxu0 0.0
  %413 = vmatpush1.msra.mxu0 %v395
  %414 = vmatprep.subr.mxu0 0.0
  %415 = vmatpush1.msra.mxu0 %v396
  %416 = vmatprep.subr.mxu0 0.0
  %417 = vmatpush1.msra.mxu0 %v397
  %418 = vmatprep.subr.mxu0 0.0
  %419 = vmatpush1.msra.mxu0 0.0
  %420 = vmatprep.subr.mxu0 0.0
  %421 = vmatpush1.msra.mxu0 0.0
  %422 = vmatprep.subr.mxu0 0.0
  %423 = vmatpush1.msra.mxu0 0.0
  %424 = vmatprep.subr.mxu0 0.0
  %425 = vmatpush1.msra.mxu0 0.0
  %426 = vmatprep.subr.mxu0 0.0
  %427 = vmatpush1.msra.mxu0 0.0
  %428 = vmatprep.subr.mxu0 0.0
  %429 = vmatpush1.msra.mxu0 0.0
  %430 = vmatprep.subr.mxu0 0.0
  %431 = vmatpush1.msra.mxu0 0.0
  %432 = vmatprep.subr.mxu0 0.0
  %433 = vmatpush1.msra.mxu0 0.0
  %434 = vmatprep.subr.mxu0 0.0
  %435 = vmatpush1.msra.mxu0 0.0
  %436 = vmatprep.subr.mxu0 0.0
  %437 = vmatpush1.msra.mxu0 0.0
  %438 = vmatprep.subr.mxu0 0.0
  %439 = vmatpush1.msra.mxu0 0.0
  %440 = vmatprep.subr.mxu0 0.0
  %441 = vmatpush1.msra.mxu0 0.0
  %442 = vmatprep.subr.mxu0 0.0
  %443 = vmatpush1.msra.mxu0 0.0
  %444 = vmatprep.subr.mxu0 0.0
  %445 = vmatpush1.msra.mxu0 0.0
  %446 = vmatprep.subr.mxu0 0.0
  %447 = vmatpush1.msra.mxu0 0.0
  %448 = vmatprep.subr.mxu0 0.0
  %449 = vmatpush1.msra.mxu0 0.0
  %450 = vmatprep.subr.mxu0 0.0
  %451 = vmatpush1.msra.mxu0 0.0
  %452 = vmatprep.subr.mxu0 0.0
  %453 = vmatpush1.msra.mxu0 0.0
  %454 = vmatprep.subr.mxu0 0.0
  %455 = vmatpush1.msra.mxu0 0.0
  %456 = vmatprep.subr.mxu0 0.0
  %457 = vmatpush1.msra.mxu0 0.0
  %458 = vmatprep.subr.mxu0 0.0
  %459 = vmatpush1.msra.mxu0 0.0
  %460 = vmatprep.subr.mxu0 0.0
  %461 = vmatpush1.msra.mxu0 0.0
  %462 = vmatprep.subr.mxu0 0.0
  %463 = vmatpush1.msra.mxu0 0.0
  %464 = vmatprep.subr.mxu0 0.0
  %465 = vmatpush1.msra.mxu0 0.0
  %466 = vmatprep.mubr.f32.mxu0 0.0
  %467 = vmatmul.mubr.f32.gmra.mrb[0].mxu0 %v400
  %v468 = vpop.f32.mrb[0].mxu0
  %v469 = vadd.f32 0.0, %v468
  %v470 = vpop.f32.mrb[0].mxu0
  %471 = vdwg.mxu0
  %472 = vst [vmem:[%s4] sm:$0x7] %v469
  // Predicated region
  $region18: #{net_forward.1} parent=0 // pred_check
    _
  $region19: #{net_forward.1} parent=0 // pred_check_branch
    %474 = sbr.rel (0) target = $region21
  $region20: #{net_forward.1} parent=0 // pred_region
    _
  $region21: #{net_forward.1} parent=0 // pred_fallthru
    _
  // Predicated region
  $region22: #{net_forward.1} parent=0 // pred_check
    _
  $region23: #{net_forward.1} parent=0 // pred_check_branch
    %476 = sbr.rel (0) target = $region25
  $region24: #{net_forward.1} parent=0 // pred_region
    _
  $region25: #{net_forward.1} parent=0 // pred_fallthru
    _

</llo_original>
